<compile_context>
chip_gen: v5e
topology: v5e:2x2
jax: 0.10.0
libtpu: 0.0.40
codegen_flags: <defaults>
</compile_context>

<pallas_src>
import jax
import jax.numpy as jnp
from jax.experimental import pallas as pl
from jax.experimental.pallas import tpu as pltpu


def _round_up(x, m):
    return (x + m - 1) // m * m


# ----------------------------------------------------------------------------
# Pallas kernel: full bidirectional GRU recurrence (masked by src_length)
# ----------------------------------------------------------------------------
def bigru_kernel(maxlen_ref, len_ref, x_ref, w_in_ref, b_in_ref,
                 whh_f_ref, bhh_f_ref, whh_b_ref, bhh_b_ref,
                 out_ref, hcat_ref, gi_ref):
    T, Bp, Ep = x_ref.shape
    Hp = whh_f_ref.shape[0]
    G = 3 * Hp

    max_len = maxlen_ref[0]          # scalar int32 from SMEM
    lens = len_ref[...]              # (Bp, 1) int32 (padded rows are 0)

    # ---- (1) hoisted input projection: one big MXU matmul for both directions ----
    x_all = x_ref[...].reshape(T * Bp, Ep)
    gi_all = jnp.dot(x_all, w_in_ref[...],
                     preferred_element_type=jnp.float32) + b_in_ref[...]
    gi_ref[...] = gi_all.reshape(T, Bp, 2 * G)

    # ---- zero the fused output slab once; timesteps >= max_len are never written ----
    out_ref[...] = jnp.zeros_like(out_ref)

    bhh_f = bhh_f_ref[...]           # (1, 3Hp)
    bhh_b = bhh_b_ref[...]

    def gru_gates(gi, gh, h):
        # PyTorch GRU gate equations (gate order: r, z, n); lane-aligned Hp slices.
        r = jax.nn.sigmoid(gi[:, 0:Hp] + gh[:, 0:Hp])
        z = jax.nn.sigmoid(gi[:, Hp:2 * Hp] + gh[:, Hp:2 * Hp])
        n = jnp.tanh(gi[:, 2 * Hp:3 * Hp] + r * gh[:, 2 * Hp:3 * Hp])
        return (1.0 - z) * n + z * h

    # ---- (3) interleaved fwd (t = i) and bwd (t = max_len-1-i) recurrence ----
    def step(i, carry):
        h_f, h_b = carry
        t_f = i
        t_b = max_len - 1 - i

        # Both recurrent matmuls issued back-to-back (independent -> overlap on MXU).
        gh_f = jnp.dot(h_f, whh_f_ref[...],
                       preferred_element_type=jnp.float32) + bhh_f
        gh_b = jnp.dot(h_b, whh_b_ref[...],
                       preferred_element_type=jnp.float32) + bhh_b

        gi_f = gi_ref[t_f, :, 0:G]        # (Bp, 3Hp), lane-aligned
        gi_b = gi_ref[t_b, :, G:2 * G]

        hf_new = gru_gates(gi_f, gh_f, h_f)
        hb_new = gru_gates(gi_b, gh_b, h_b)

        valid_f = t_f < lens              # (Bp, 1) bool
        valid_b = t_b < lens

        # Lane-dense (Bp, Hp) full-tile stores into the fused output slab.
        out_ref[t_f, :, 0:Hp] = jnp.where(valid_f, hf_new, 0.0)
        out_ref[t_b, :, Hp:2 * Hp] = jnp.where(valid_b, hb_new, 0.0)

        return (jnp.where(valid_f, hf_new, h_f),
                jnp.where(valid_b, hb_new, h_b))

    h0 = jnp.zeros((Bp, Hp), jnp.float32)
    h_f, h_b = jax.lax.fori_loop(0, max_len, step, (h0, h0))

    hcat_ref[:, 0:Hp] = h_f
    hcat_ref[:, Hp:2 * Hp] = h_b


# ----------------------------------------------------------------------------
# Wrapper: padding / gate re-packing / layout plumbing in plain JAX
# ----------------------------------------------------------------------------
def _pack_gate_weights(w, H, H_pad, R_pad):
    """(R, 3H) -> (R_pad, 3*H_pad): each gate block zero-padded to H_pad lanes."""
    R = w.shape[0]
    blocks = []
    for g in range(3):
        blk = w[:, g * H:(g + 1) * H]
        blocks.append(jnp.pad(blk, ((0, R_pad - R), (0, H_pad - H))))
    return jnp.concatenate(blocks, axis=1)


def recurrent_encoder_forward(embed_src, src_length, mask, params):
    """Mirrors RecurrentEncoder.forward (bidirectional GRU, num_layers=1).

    embed_src: (B, T, E) float32
    src_length: (B,) int32 (sorted descending, as pack_padded_sequence requires)
    mask: unused in forward (PyTorch only shape-checks it).
    Returns (output (B, T, 2H), hidden_concat (B, 2H)).
    """
    del mask
    B, T, E = embed_src.shape
    H = params["whh_f"].shape[0]

    # (2) sublane/lane-aligned padded shapes
    Bp = _round_up(max(B, 8), 8)
    Hp = _round_up(max(H, 128), 128)
    Ep = _round_up(max(E, 128), 128)

    # time-major + zero padding (padded batch rows get len=0 -> fully masked)
    x_tm = jnp.transpose(embed_src.astype(jnp.float32), (1, 0, 2))       # (T, B, E)
    x_pad = jnp.pad(x_tm, ((0, 0), (0, Bp - B), (0, Ep - E)))

    lens = src_length.astype(jnp.int32)
    lens_pad = jnp.pad(lens, (0, Bp - B)).reshape(Bp, 1)
    max_len = jnp.max(lens).astype(jnp.int32).reshape(1)

    # pre-packed, gate-block-padded weights: input projection fused for both dirs
    wih_f = _pack_gate_weights(params["wih_f"], H, Hp, Ep)
    wih_b = _pack_gate_weights(params["wih_b"], H, Hp, Ep)
    w_in = jnp.concatenate([wih_f, wih_b], axis=1)                        # (Ep, 6Hp)
    bih_f = _pack_gate_weights(params["bih_f"], H, Hp, 1)
    bih_b = _pack_gate_weights(params["bih_b"], H, Hp, 1)
    b_in = jnp.concatenate([bih_f, bih_b], axis=1)                        # (1, 6Hp)

    whh_f = _pack_gate_weights(params["whh_f"], H, Hp, Hp)                # (Hp, 3Hp)
    whh_b = _pack_gate_weights(params["whh_b"], H, Hp, Hp)
    bhh_f = _pack_gate_weights(params["bhh_f"], H, Hp, 1)
    bhh_b = _pack_gate_weights(params["bhh_b"], H, Hp, 1)

    vmem = pl.BlockSpec(memory_space=pltpu.MemorySpace.VMEM)
    smem = pl.BlockSpec(memory_space=pltpu.MemorySpace.SMEM)

    out_pad, hcat_pad = pl.pallas_call(
        bigru_kernel,
        out_shape=(
            jax.ShapeDtypeStruct((T, Bp, 2 * Hp), jnp.float32),   # fused [fwd | bwd]
            jax.ShapeDtypeStruct((Bp, 2 * Hp), jnp.float32),
        ),
        in_specs=[smem, vmem, vmem, vmem, vmem, vmem, vmem, vmem, vmem],
        out_specs=(vmem, vmem),
        scratch_shapes=[pltpu.VMEM((T, Bp, 6 * Hp), jnp.float32)],  # precomputed gi slab
    )(max_len, lens_pad, x_pad, w_in, b_in, whh_f, bhh_f, whh_b, bhh_b)

    # strip padding, restore batch-first (B, T, 2H) convention
    fwd = out_pad[:, :B, :H]
    bwd = out_pad[:, :B, Hp:Hp + H]
    output = jnp.transpose(jnp.concatenate([fwd, bwd], axis=-1), (1, 0, 2))
    hidden_concat = jnp.concatenate(
        [hcat_pad[:B, :H], hcat_pad[:B, Hp:Hp + H]], axis=-1)
    return output, hidden_concat


# ----------------------------------------------------------------------------
# Deterministic parameter init (matches nn.GRU shapes; uniform(-1/sqrt(H), 1/sqrt(H)))
# ----------------------------------------------------------------------------
def init_params(key, emb_size, hidden_size):
    k = 1.0 / jnp.sqrt(hidden_size)
    keys = jax.random.split(key, 8)

    def u(kk, shape):
        return jax.random.uniform(kk, shape, jnp.float32, -k, k)

    # Stored pre-transposed for x @ W: (E, 3H) and (H, 3H). Biases as (1, 3H).
    return dict(
        wih_f=u(keys[0], (emb_size, 3 * hidden_size)),
        whh_f=u(keys[1], (hidden_size, 3 * hidden_size)),
        bih_f=u(keys[2], (1, 3 * hidden_size)),
        bhh_f=u(keys[3], (1, 3 * hidden_size)),
        wih_b=u(keys[4], (emb_size, 3 * hidden_size)),
        whh_b=u(keys[5], (hidden_size, 3 * hidden_size)),
        bih_b=u(keys[6], (1, 3 * hidden_size)),
        bhh_b=u(keys[7], (1, 3 * hidden_size)),
    )


# ----------------------------------------------------------------------------
# Pure-JAX reference (same masked-GRU semantics) for a correctness check
# ----------------------------------------------------------------------------
def gru_dir_ref(x, lens, wih, whh, bih, bhh, reverse):
    B, T, _ = x.shape
    H = whh.shape[0]

    def cell(h, x_t):
        gi = x_t @ wih + bih
        gh = h @ whh + bhh
        r = jax.nn.sigmoid(gi[:, :H] + gh[:, :H])
        z = jax.nn.sigmoid(gi[:, H:2 * H] + gh[:, H:2 * H])
        n = jnp.tanh(gi[:, 2 * H:] + r * gh[:, 2 * H:])
        return (1.0 - z) * n + z * h

    ts = range(T - 1, -1, -1) if reverse else range(T)
    h = jnp.zeros((B, H), jnp.float32)
    outs = [None] * T
    for t in ts:
        h_new = cell(h, x[:, t, :])
        valid = (t < lens)[:, None]
        outs[t] = jnp.where(valid, h_new, 0.0)
        h = jnp.where(valid, h_new, h)
    return jnp.stack(outs, axis=1), h


def reference_forward(embed_src, src_length, params):
    x = embed_src.astype(jnp.float32)
    lens = src_length.astype(jnp.int32)
    of, hf = gru_dir_ref(x, lens, params["wih_f"], params["whh_f"],
                         params["bih_f"], params["bhh_f"], reverse=False)
    ob, hb = gru_dir_ref(x, lens, params["wih_b"], params["whh_b"],
                         params["bih_b"], params["bhh_b"], reverse=True)
    return jnp.concatenate([of, ob], axis=-1), jnp.concatenate([hf, hb], axis=-1)


if __name__ == "__main__":
    B, T, E, H = 2, 8, 32, 32
    key = jax.random.PRNGKey(0)
    k_x, k_p = jax.random.split(key)

    embed_src = jax.random.normal(k_x, (B, T, E), jnp.float32)
    src_length = jnp.array([8, 5], jnp.int32)          # sorted descending, as PyTorch requires
    # build mask like PyTorch would pass (zeros in padding); unused by forward
    t_idx = jnp.arange(T)[None, :, None]
    mask = (t_idx < src_length[:, None, None]).astype(jnp.float32) * jnp.ones((B, T, E))

    params = init_params(k_p, E, H)

    output, hidden_concat = recurrent_encoder_forward(embed_src, src_length, mask, params)
    jax.block_until_ready((output, hidden_concat))

    ref_out, ref_hcat = reference_forward(embed_src, src_length, params)
    assert output.shape == (B, T, 2 * H)
    assert hidden_concat.shape == (B, 2 * H)
    assert jnp.allclose(output, ref_out, atol=1e-4), "output mismatch vs reference"
    assert jnp.allclose(hidden_concat, ref_hcat, atol=1e-4), "hidden_concat mismatch vs reference"

    print("KERNEL_OK")
</pallas_src>

<mosaic_0001>
module attributes {stable_mosaic.version = 11 : i64} {
  func.func @bigru_kernel(%arg0: memref<1xi32, #tpu.memory_space<smem>>, %arg1: memref<8x1xi32, #tpu.memory_space<vmem>>, %arg2: memref<8x8x128xf32, #tpu.memory_space<vmem>>, %arg3: memref<128x768xf32, #tpu.memory_space<vmem>>, %arg4: memref<1x768xf32, #tpu.memory_space<vmem>>, %arg5: memref<128x384xf32, #tpu.memory_space<vmem>>, %arg6: memref<1x384xf32, #tpu.memory_space<vmem>>, %arg7: memref<128x384xf32, #tpu.memory_space<vmem>>, %arg8: memref<1x384xf32, #tpu.memory_space<vmem>>, %arg9: memref<8x8x256xf32, #tpu.memory_space<vmem>>, %arg10: memref<8x256xf32, #tpu.memory_space<vmem>>, %arg11: memref<8x8x768xf32, #tpu.memory_space<vmem>>) attributes {dimension_semantics = [], scalar_prefetch = 0 : i64, scratch_operands = 1 : i64, tpu.core_type = #tpu.core_type<tc>} {
    %c0 = arith.constant 0 : index
    %0 = memref.load %arg0[%c0] : memref<1xi32, #tpu.memory_space<smem>>
    %c0_0 = arith.constant 0 : index
    %c0_1 = arith.constant 0 : index
    %1 = vector.load %arg1[%c0_0, %c0_1] : memref<8x1xi32, #tpu.memory_space<vmem>>, vector<8x1xi32>
    %c0_2 = arith.constant 0 : index
    %c0_3 = arith.constant 0 : index
    %c0_4 = arith.constant 0 : index
    %2 = vector.load %arg2[%c0_2, %c0_3, %c0_4] : memref<8x8x128xf32, #tpu.memory_space<vmem>>, vector<8x8x128xf32>
    %3 = vector.shape_cast %2 : vector<8x8x128xf32> to vector<64x128xf32>
    %c0_5 = arith.constant 0 : index
    %c0_6 = arith.constant 0 : index
    %4 = vector.load %arg3[%c0_5, %c0_6] : memref<128x768xf32, #tpu.memory_space<vmem>>, vector<128x768xf32>
    %cst = arith.constant dense<0.000000e+00> : vector<64x768xf32>
    %5 = tpu.matmul %3, %4, %cst {dimension_numbers = #tpu.dot_dimension_numbers<[1], [0], [0], [1], [0, 0, 1, 1], [], []>} : vector<64x128xf32>, vector<128x768xf32>, vector<64x768xf32> -> vector<64x768xf32>
    %c0_7 = arith.constant 0 : index
    %c0_8 = arith.constant 0 : index
    %6 = vector.load %arg4[%c0_7, %c0_8] : memref<1x768xf32, #tpu.memory_space<vmem>>, vector<1x768xf32>
    %7 = vector.broadcast %6 : vector<1x768xf32> to vector<64x768xf32>
    %8 = arith.addf %5, %7 : vector<64x768xf32>
    %9 = vector.shape_cast %8 : vector<64x768xf32> to vector<8x8x768xf32>
    %c0_9 = arith.constant 0 : index
    %c0_10 = arith.constant 0 : index
    %c0_11 = arith.constant 0 : index
    %10 = vector.load %arg11[%c0_9, %c0_10, %c0_11] : memref<8x8x768xf32, #tpu.memory_space<vmem>>, vector<8x8x768xf32>
    tpu.vector_store %arg11[%c0_9, %c0_10, %c0_11], %9 {strides = array<i32>} : memref<8x8x768xf32, #tpu.memory_space<vmem>>, vector<8x8x768xf32>,
    %cst_12 = arith.constant 0.000000e+00 : f32
    %11 = vector.broadcast %cst_12 : f32 to vector<8x8x256xf32>
    %c0_13 = arith.constant 0 : index
    %c0_14 = arith.constant 0 : index
    %c0_15 = arith.constant 0 : index
    %12 = vector.load %arg9[%c0_13, %c0_14, %c0_15] : memref<8x8x256xf32, #tpu.memory_space<vmem>>, vector<8x8x256xf32>
    tpu.vector_store %arg9[%c0_13, %c0_14, %c0_15], %11 {strides = array<i32>} : memref<8x8x256xf32, #tpu.memory_space<vmem>>, vector<8x8x256xf32>,
    %c0_16 = arith.constant 0 : index
    %c0_17 = arith.constant 0 : index
    %13 = vector.load %arg6[%c0_16, %c0_17] : memref<1x384xf32, #tpu.memory_space<vmem>>, vector<1x384xf32>
    %c0_18 = arith.constant 0 : index
    %c0_19 = arith.constant 0 : index
    %14 = vector.load %arg8[%c0_18, %c0_19] : memref<1x384xf32, #tpu.memory_space<vmem>>, vector<1x384xf32>
    %cst_20 = arith.constant 0.000000e+00 : f32
    %15 = vector.broadcast %cst_20 : f32 to vector<8x128xf32>
    %c0_i32 = arith.constant 0 : i32
    %16 = arith.subi %0, %c0_i32 : i32
    %17 = arith.addi %c0_i32, %16 : i32
    %c1_i32 = arith.constant 1 : i32
    %18:2 = scf.for %arg12 = %c0_i32 to %17 step %c1_i32 iter_args(%arg13 = %15, %arg14 = %15) -> (vector<8x128xf32>, vector<8x128xf32>)  : i32 {
      %c1_i32_24 = arith.constant 1 : i32
      %21 = arith.subi %0, %c1_i32_24 : i32
      %22 = arith.subi %21, %arg12 : i32
      %c0_25 = arith.constant 0 : index
      %c0_26 = arith.constant 0 : index
      %23 = vector.load %arg5[%c0_25, %c0_26] : memref<128x384xf32, #tpu.memory_space<vmem>>, vector<128x384xf32>
      %cst_27 = arith.constant dense<0.000000e+00> : vector<8x384xf32>
      %24 = tpu.matmul %arg13, %23, %cst_27 {dimension_numbers = #tpu.dot_dimension_numbers<[1], [0], [0], [1], [0, 0, 1, 1], [], []>} : vector<8x128xf32>, vector<128x384xf32>, vector<8x384xf32> -> vector<8x384xf32>
      %25 = vector.broadcast %13 : vector<1x384xf32> to vector<8x384xf32>
      %26 = arith.addf %24, %25 : vector<8x384xf32>
      %c0_28 = arith.constant 0 : index
      %c0_29 = arith.constant 0 : index
      %27 = vector.load %arg7[%c0_28, %c0_29] : memref<128x384xf32, #tpu.memory_space<vmem>>, vector<128x384xf32>
      %cst_30 = arith.constant dense<0.000000e+00> : vector<8x384xf32>
      %28 = tpu.matmul %arg14, %27, %cst_30 {dimension_numbers = #tpu.dot_dimension_numbers<[1], [0], [0], [1], [0, 0, 1, 1], [], []>} : vector<8x128xf32>, vector<128x384xf32>, vector<8x384xf32> -> vector<8x384xf32>
      %29 = vector.broadcast %14 : vector<1x384xf32> to vector<8x384xf32>
      %30 = arith.addf %28, %29 : vector<8x384xf32>
      %31 = arith.index_cast %arg12 : i32 to index
      %c0_31 = arith.constant 0 : index
      %c0_32 = arith.constant 0 : index
      %32 = vector.load %arg11[%31, %c0_31, %c0_32] : memref<8x8x768xf32, #tpu.memory_space<vmem>>, vector<1x8x384xf32>
      %33 = vector.shape_cast %32 : vector<1x8x384xf32> to vector<8x384xf32>
      %34 = arith.index_cast %22 : i32 to index
      %c0_33 = arith.constant 0 : index
      %c384 = arith.constant 384 : index
      %35 = vector.load %arg11[%34, %c0_33, %c384] : memref<8x8x768xf32, #tpu.memory_space<vmem>>, vector<1x8x384xf32>
      %36 = vector.shape_cast %35 : vector<1x8x384xf32> to vector<8x384xf32>
      %37 = vector.extract_strided_slice %33 {offsets = [0, 0], sizes = [8, 128], strides = [1, 1]} : vector<8x384xf32> to vector<8x128xf32>
      %38 = vector.extract_strided_slice %26 {offsets = [0, 0], sizes = [8, 128], strides = [1, 1]} : vector<8x384xf32> to vector<8x128xf32>
      %39 = arith.addf %37, %38 : vector<8x128xf32>
      %40 = arith.negf %39 : vector<8x128xf32>
      %41 = math.exp %40 : vector<8x128xf32>
      %cst_34 = arith.constant 1.000000e+00 : f32
      %42 = vector.broadcast %cst_34 : f32 to vector<8x128xf32>
      %43 = arith.addf %42, %41 : vector<8x128xf32>
      %44 = arith.divf %42, %43 : vector<8x128xf32>
      %45 = vector.extract_strided_slice %33 {offsets = [0, 128], sizes = [8, 128], strides = [1, 1]} : vector<8x384xf32> to vector<8x128xf32>
      %46 = vector.extract_strided_slice %26 {offsets = [0, 128], sizes = [8, 128], strides = [1, 1]} : vector<8x384xf32> to vector<8x128xf32>
      %47 = arith.addf %45, %46 : vector<8x128xf32>
      %48 = arith.negf %47 : vector<8x128xf32>
      %49 = math.exp %48 : vector<8x128xf32>
      %cst_35 = arith.constant 1.000000e+00 : f32
      %50 = vector.broadcast %cst_35 : f32 to vector<8x128xf32>
      %51 = arith.addf %50, %49 : vector<8x128xf32>
      %52 = arith.divf %50, %51 : vector<8x128xf32>
      %53 = vector.extract_strided_slice %33 {offsets = [0, 256], sizes = [8, 128], strides = [1, 1]} : vector<8x384xf32> to vector<8x128xf32>
      %54 = vector.extract_strided_slice %26 {offsets = [0, 256], sizes = [8, 128], strides = [1, 1]} : vector<8x384xf32> to vector<8x128xf32>
      %55 = arith.mulf %44, %54 : vector<8x128xf32>
      %56 = arith.addf %53, %55 : vector<8x128xf32>
      %57 = math.tanh %56 : vector<8x128xf32>
      %cst_36 = arith.constant 1.000000e+00 : f32
      %58 = vector.broadcast %cst_36 : f32 to vector<8x128xf32>
      %59 = arith.subf %58, %52 : vector<8x128xf32>
      %60 = arith.mulf %59, %57 : vector<8x128xf32>
      %61 = arith.mulf %52, %arg13 : vector<8x128xf32>
      %62 = arith.addf %60, %61 : vector<8x128xf32>
      %63 = vector.extract_strided_slice %36 {offsets = [0, 0], sizes = [8, 128], strides = [1, 1]} : vector<8x384xf32> to vector<8x128xf32>
      %64 = vector.extract_strided_slice %30 {offsets = [0, 0], sizes = [8, 128], strides = [1, 1]} : vector<8x384xf32> to vector<8x128xf32>
      %65 = arith.addf %63, %64 : vector<8x128xf32>
      %66 = arith.negf %65 : vector<8x128xf32>
      %67 = math.exp %66 : vector<8x128xf32>
      %cst_37 = arith.constant 1.000000e+00 : f32
      %68 = vector.broadcast %cst_37 : f32 to vector<8x128xf32>
      %69 = arith.addf %68, %67 : vector<8x128xf32>
      %70 = arith.divf %68, %69 : vector<8x128xf32>
      %71 = vector.extract_strided_slice %36 {offsets = [0, 128], sizes = [8, 128], strides = [1, 1]} : vector<8x384xf32> to vector<8x128xf32>
      %72 = vector.extract_strided_slice %30 {offsets = [0, 128], sizes = [8, 128], strides = [1, 1]} : vector<8x384xf32> to vector<8x128xf32>
      %73 = arith.addf %71, %72 : vector<8x128xf32>
      %74 = arith.negf %73 : vector<8x128xf32>
      %75 = math.exp %74 : vector<8x128xf32>
      %cst_38 = arith.constant 1.000000e+00 : f32
      %76 = vector.broadcast %cst_38 : f32 to vector<8x128xf32>
      %77 = arith.addf %76, %75 : vector<8x128xf32>
      %78 = arith.divf %76, %77 : vector<8x128xf32>
      %79 = vector.extract_strided_slice %36 {offsets = [0, 256], sizes = [8, 128], strides = [1, 1]} : vector<8x384xf32> to vector<8x128xf32>
      %80 = vector.extract_strided_slice %30 {offsets = [0, 256], sizes = [8, 128], strides = [1, 1]} : vector<8x384xf32> to vector<8x128xf32>
      %81 = arith.mulf %70, %80 : vector<8x128xf32>
      %82 = arith.addf %79, %81 : vector<8x128xf32>
      %83 = math.tanh %82 : vector<8x128xf32>
      %cst_39 = arith.constant 1.000000e+00 : f32
      %84 = vector.broadcast %cst_39 : f32 to vector<8x128xf32>
      %85 = arith.subf %84, %78 : vector<8x128xf32>
      %86 = arith.mulf %85, %83 : vector<8x128xf32>
      %87 = arith.mulf %78, %arg14 : vector<8x128xf32>
      %88 = arith.addf %86, %87 : vector<8x128xf32>
      %89 = vector.broadcast %arg12 : i32 to vector<8x1xi32>
      %90 = arith.cmpi slt, %89, %1 : vector<8x1xi32>
      %91 = vector.broadcast %22 : i32 to vector<8x1xi32>
      %92 = arith.cmpi slt, %91, %1 : vector<8x1xi32>
      %cst_40 = arith.constant 0.000000e+00 : f32
      %93 = vector.shape_cast %90 : vector<8x1xi1> to vector<8x1xi1>
      %94 = vector.broadcast %93 : vector<8x1xi1> to vector<8x128xi1>
      %95 = vector.broadcast %cst_40 : f32 to vector<8x128xf32>
      %96 = arith.select %94, %62, %95 : vector<8x128xi1>, vector<8x128xf32>
      %97 = arith.index_cast %arg12 : i32 to index
      %c0_41 = arith.constant 0 : index
      %c0_42 = arith.constant 0 : index
      %98 = vector.load %arg9[%97, %c0_41, %c0_42] : memref<8x8x256xf32, #tpu.memory_space<vmem>>, vector<1x8x128xf32>
      %99 = vector.shape_cast %98 : vector<1x8x128xf32> to vector<8x128xf32>
      %100 = vector.shape_cast %96 : vector<8x128xf32> to vector<1x8x128xf32>
      tpu.vector_store %arg9[%97, %c0_41, %c0_42], %100 {strides = array<i32>} : memref<8x8x256xf32, #tpu.memory_space<vmem>>, vector<1x8x128xf32>,
      %cst_43 = arith.constant 0.000000e+00 : f32
      %101 = vector.shape_cast %92 : vector<8x1xi1> to vector<8x1xi1>
      %102 = vector.broadcast %101 : vector<8x1xi1> to vector<8x128xi1>
      %103 = vector.broadcast %cst_43 : f32 to vector<8x128xf32>
      %104 = arith.select %102, %88, %103 : vector<8x128xi1>, vector<8x128xf32>
      %105 = arith.index_cast %22 : i32 to index
      %c0_44 = arith.constant 0 : index
      %c128_45 = arith.constant 128 : index
      %106 = vector.load %arg9[%105, %c0_44, %c128_45] : memref<8x8x256xf32, #tpu.memory_space<vmem>>, vector<1x8x128xf32>
      %107 = vector.shape_cast %106 : vector<1x8x128xf32> to vector<8x128xf32>
      %108 = vector.shape_cast %104 : vector<8x128xf32> to vector<1x8x128xf32>
      tpu.vector_store %arg9[%105, %c0_44, %c128_45], %108 {strides = array<i32>} : memref<8x8x256xf32, #tpu.memory_space<vmem>>, vector<1x8x128xf32>,
      %109 = vector.shape_cast %90 : vector<8x1xi1> to vector<8x1xi1>
      %110 = vector.broadcast %109 : vector<8x1xi1> to vector<8x128xi1>
      %111 = arith.select %110, %62, %arg13 : vector<8x128xi1>, vector<8x128xf32>
      %112 = vector.shape_cast %92 : vector<8x1xi1> to vector<8x1xi1>
      %113 = vector.broadcast %112 : vector<8x1xi1> to vector<8x128xi1>
      %114 = arith.select %113, %88, %arg14 : vector<8x128xi1>, vector<8x128xf32>
      scf.yield %111, %114 : vector<8x128xf32>, vector<8x128xf32>
    }
    %c0_21 = arith.constant 0 : index
    %c0_22 = arith.constant 0 : index
    %19 = vector.load %arg10[%c0_21, %c0_22] : memref<8x256xf32, #tpu.memory_space<vmem>>, vector<8x128xf32>
    tpu.vector_store %arg10[%c0_21, %c0_22], %18#0 {strides = array<i32>} : memref<8x256xf32, #tpu.memory_space<vmem>>, vector<8x128xf32>,
    %c0_23 = arith.constant 0 : index
    %c128 = arith.constant 128 : index
    %20 = vector.load %arg10[%c0_23, %c128] : memref<8x256xf32, #tpu.memory_space<vmem>>, vector<8x128xf32>
    tpu.vector_store %arg10[%c0_23, %c128], %18#1 {strides = array<i32>} : memref<8x256xf32, #tpu.memory_space<vmem>>, vector<8x128xf32>,
    return
  }
}

</mosaic_0001>

<llo_original>
// kernel: tpu_custom_call.1
$region0: #{tpu_custom_call.1}
  #allocation0 [shape = 'u32[]', space=smem, size = 0x4, offset = 0x4, fixed_abs, tag = 'smem constant byte address 0x4 - core index']
  #allocation1 [shape = 'u32[72,128]{1,0:T(1,128)}', space=vmem, size = 0x9000, scoped, tag = 'internal scratch']
  #allocation2 [shape = 'f32[8,8,768]{2,1,0:T(8,128)}', space=vmem, size = 0x30000, scoped, tag = 'scratch operand']
  #allocation3 [shape = 's32[1]{0:T(128)S(6)}', space=smem, size = 0x200, scoped, tag = 'scoped memory for tpu_custom_call.1']
  %s0 = inlined_call_operand.<no memory space> [shape: s32[1], index: 0, kind: input, shape index: {}]
  %s1 = inlined_call_operand.vmem [shape: s32[8,1], index: 1, kind: input, shape index: {}]
  %s2 = inlined_call_operand.hbm [shape: f32[8,8,128], index: 2, kind: input, shape index: {}]
  %s3 = inlined_call_operand.hbm [shape: f32[128,768], index: 3, kind: input, shape index: {}]
  %s4 = inlined_call_operand.vmem [shape: f32[1,768], index: 4, kind: input, shape index: {}]
  %s5 = inlined_call_operand.hbm [shape: f32[128,384], index: 5, kind: input, shape index: {}]
  %s6 = inlined_call_operand.vmem [shape: f32[1,384], index: 6, kind: input, shape index: {}]
  %s7 = inlined_call_operand.hbm [shape: f32[128,384], index: 7, kind: input, shape index: {}]
  %s8 = inlined_call_operand.vmem [shape: f32[1,384], index: 8, kind: input, shape index: {}]
  %s9 = inlined_call_operand.hbm [shape: f32[8,8,256], index: 9, kind: output, shape index: {0}]
  %s10 = inlined_call_operand.hbm [shape: f32[8,256], index: 10, kind: output, shape index: {1}]
  %11 = xla_tuple %s9, %s10
  %s12 = sld [smem:[#allocation0]]
  $region77: #{tpu_custom_call.1} parent=0
    _
  %s14 = ssub.s32 1, %s12
  %s15 = scalar_select 0, %s14, %s12
  %16 = sst [smem:[#allocation3]] %s0
  $region1: #{tpu_custom_call.1} parent=0
    #allocation4 [shape = 'u8[32768]{0}', space=vmem, size = 0x8000, scoped, tag = 'input window, operand 2, single buffered']
    #allocation5 [shape = 's32[1]{0}', space=sflag, size = 0x4, scoped, tag = 'scoped memory for tpu_custom_call.1']
    #allocation6 [shape = 's32[1]{0}', space=sflag, size = 0x4, scoped, tag = 'scoped memory for tpu_custom_call.1']
    #allocation7 [shape = 'u8[393216]{0}', space=vmem, size = 0x60000, scoped, tag = 'input window, operand 3, single buffered']
    #allocation8 [shape = 's32[1]{0}', space=sflag, size = 0x4, scoped, tag = 'scoped memory for tpu_custom_call.1']
    #allocation9 [shape = 'u8[196608]{0}', space=vmem, size = 0x30000, scoped, tag = 'input window, operand 5, single buffered']
    #allocation10 [shape = 'u8[196608]{0}', space=vmem, size = 0x30000, scoped, tag = 'input window, operand 7, single buffered']
    #allocation11 [shape = 's32[1]{0}', space=sflag, size = 0x4, scoped, tag = 'scoped memory for tpu_custom_call.1']
    #allocation12 [shape = 'u8[65536]{0}', space=vmem, size = 0x10000, scoped, tag = 'output window, operand 0, single buffered']
    #allocation13 [shape = 'u8[8192]{0}', space=vmem, size = 0x2000, scoped, tag = 'output window, operand 1, single buffered']
    #allocation14 [shape = 's32[1]{0}', space=sflag, size = 0x4, scoped, tag = 'scoped memory for tpu_custom_call.1']
    %17 = vsyncpa [#allocation5], 0
    %18 = vsyncpa [#allocation8], 0
    %19 = vsyncpa [#allocation11], 0
    %20 = vsyncpa [#allocation6], 0
    %21 = vsyncpa [#allocation14], 0
    // Predicated region
    $region2: #{tpu_custom_call.1} parent=1 // pred_check
      _
    $region3: #{tpu_custom_call.1} parent=1 // pred_check_branch
      %23 = sbr.rel (0) target = $region5
    $region4: #{tpu_custom_call.1} parent=1 // pred_region
      _
    $region5: #{tpu_custom_call.1} parent=1 // pred_fallthru
      _
    // Predicated region
    $region6: #{tpu_custom_call.1} parent=1 // pred_check
      _
    $region7: #{tpu_custom_call.1} parent=1 // pred_check_branch
      %25 = sbr.rel (0) target = $region9
    $region8: #{tpu_custom_call.1} parent=1 // pred_region
      _
    $region9: #{tpu_custom_call.1} parent=1 // pred_fallthru
      _
    // Predicated region
    $region10: #{tpu_custom_call.1} parent=1 // pred_check
      _
    $region11: #{tpu_custom_call.1} parent=1 // pred_check_branch
      %27 = sbr.rel (0) target = $region13
    $region12: #{tpu_custom_call.1} parent=1 // pred_region
      %29 = vsyncadd [#allocation5], 0
      %s30 = sshll.u32 %s2, 4
      %s31 = int_to_ptr.hbm [resolvable:$true] %s30
      %s32 = sshll.u32 [#allocation4], 4
      %s33 = int_to_ptr.vmem [resolvable:$true] %s32
      %38 = dma.hbm_to_vmem [thread:$0]  %s31, 1024, %s33, [#allocation5], 128, 128, 8
    $region13: #{tpu_custom_call.1} parent=1 // pred_fallthru
      _
    // Predicated region
    $region14: #{tpu_custom_call.1} parent=1 // pred_check
      _
    $region15: #{tpu_custom_call.1} parent=1 // pred_check_branch
      %40 = sbr.rel (0) target = $region17
    $region16: #{tpu_custom_call.1} parent=1 // pred_region
      %42 = vsyncadd [#allocation8], 0
      %s43 = sshll.u32 %s3, 4
      %s44 = int_to_ptr.hbm [resolvable:$true] %s43
      %s45 = sshll.u32 [#allocation7], 4
      %s46 = int_to_ptr.vmem [resolvable:$true] %s45
      %51 = dma.hbm_to_vmem [thread:$0]  %s44, 12288, %s46, [#allocation8], 768, 768, 48
    $region17: #{tpu_custom_call.1} parent=1 // pred_fallthru
      _
    // Predicated region
    $region18: #{tpu_custom_call.1} parent=1 // pred_check
      _
    $region19: #{tpu_custom_call.1} parent=1 // pred_check_branch
      %53 = sbr.rel (0) target = $region21
    $region20: #{tpu_custom_call.1} parent=1 // pred_region
      _
    $region21: #{tpu_custom_call.1} parent=1 // pred_fallthru
      _
    // Predicated region
    $region22: #{tpu_custom_call.1} parent=1 // pred_check
      _
    $region23: #{tpu_custom_call.1} parent=1 // pred_check_branch
      %55 = sbr.rel (0) target = $region25
    $region24: #{tpu_custom_call.1} parent=1 // pred_region
      %57 = vsyncadd [#allocation8], 0
      %s58 = sshll.u32 %s5, 4
      %s59 = int_to_ptr.hbm [resolvable:$true] %s58
      %s60 = sshll.u32 [#allocation9], 4
      %s61 = int_to_ptr.vmem [resolvable:$true] %s60
      %66 = dma.hbm_to_vmem [thread:$0]  %s59, 6144, %s61, [#allocation8], 384, 384, 24
    $region25: #{tpu_custom_call.1} parent=1 // pred_fallthru
      _
    // Predicated region
    $region26: #{tpu_custom_call.1} parent=1 // pred_check
      _
    $region27: #{tpu_custom_call.1} parent=1 // pred_check_branch
      %68 = sbr.rel (0) target = $region29
    $region28: #{tpu_custom_call.1} parent=1 // pred_region
      _
    $region29: #{tpu_custom_call.1} parent=1 // pred_fallthru
      _
    // Predicated region
    $region30: #{tpu_custom_call.1} parent=1 // pred_check
      _
    $region31: #{tpu_custom_call.1} parent=1 // pred_check_branch
      %70 = sbr.rel (0) target = $region33
    $region32: #{tpu_custom_call.1} parent=1 // pred_region
      %72 = vsyncadd [#allocation11], 0
      %s73 = sshll.u32 %s7, 4
      %s74 = int_to_ptr.hbm [resolvable:$true] %s73
      %s75 = sshll.u32 [#allocation10], 4
      %s76 = int_to_ptr.vmem [resolvable:$true] %s75
      %81 = dma.hbm_to_vmem [thread:$0]  %s74, 6144, %s76, [#allocation11], 384, 384, 24
    $region33: #{tpu_custom_call.1} parent=1 // pred_fallthru
      _
    // Predicated region
    $region34: #{tpu_custom_call.1} parent=1 // pred_check
      _
    $region35: #{tpu_custom_call.1} parent=1 // pred_check_branch
      %83 = sbr.rel (0) target = $region37
    $region36: #{tpu_custom_call.1} parent=1 // pred_region
      _
    $region37: #{tpu_custom_call.1} parent=1 // pred_fallthru
      _
    // Predicated region
    $region38: #{tpu_custom_call.1} parent=1 // pred_check
      _
    $region39: #{tpu_custom_call.1} parent=1 // pred_check_branch
      %85 = sbr.rel (0) target = $region41
    $region40: #{tpu_custom_call.1} parent=1 // pred_region
      %87 = dma.done [#allocation5], 1024
    $region41: #{tpu_custom_call.1} parent=1 // pred_fallthru
      _
    // Predicated region
    $region42: #{tpu_custom_call.1} parent=1 // pred_check
      _
    $region43: #{tpu_custom_call.1} parent=1 // pred_check_branch
      %89 = sbr.rel (0) target = $region45
    $region44: #{tpu_custom_call.1} parent=1 // pred_region
      %91 = dma.done [#allocation8], 12288
    $region45: #{tpu_custom_call.1} parent=1 // pred_fallthru
      _
    // Predicated region
    $region46: #{tpu_custom_call.1} parent=1 // pred_check
      _
    $region47: #{tpu_custom_call.1} parent=1 // pred_check_branch
      %93 = sbr.rel (0) target = $region49
    $region48: #{tpu_custom_call.1} parent=1 // pred_region
      %95 = dma.done [#allocation8], 6144
    $region49: #{tpu_custom_call.1} parent=1 // pred_fallthru
      _
    // Predicated region
    $region50: #{tpu_custom_call.1} parent=1 // pred_check
      _
    $region51: #{tpu_custom_call.1} parent=1 // pred_check_branch
      %97 = sbr.rel (0) target = $region53
    $region52: #{tpu_custom_call.1} parent=1 // pred_region
      %99 = dma.done [#allocation11], 6144
    $region53: #{tpu_custom_call.1} parent=1 // pred_fallthru
      _
    %s100 = sld [smem:[#allocation3]]
    %v101 = vld [vmem:[%s1] sm:$0xff]
    %v102 = vld [vmem:[#allocation4] sm:$0xff]
    %v103 = vld [vmem:[#allocation4 + $0x8] sm:$0xff]
    %v104 = vld [vmem:[#allocation4 + $0x10] sm:$0xff]
    %v105 = vld [vmem:[#allocation4 + $0x18] sm:$0xff]
    %v106 = vld [vmem:[#allocation4 + $0x20] sm:$0xff]
    %v107 = vld [vmem:[#allocation4 + $0x28] sm:$0xff]
    %v108 = vld [vmem:[#allocation4 + $0x30] sm:$0xff]
    %v109 = vld [vmem:[#allocation4 + $0x38] sm:$0xff]
    %v110 = vld [vmem:[#allocation7] sm:$0xff]
    %v111 = vld [vmem:[#allocation7 + $0x8] sm:$0xff]
    %v112 = vld [vmem:[#allocation7 + $0x10] sm:$0xff]
    %v113 = vld [vmem:[#allocation7 + $0x18] sm:$0xff]
    %v114 = vld [vmem:[#allocation7 + $0x20] sm:$0xff]
    %v115 = vld [vmem:[#allocation7 + $0x28] sm:$0xff]
    %v116 = vld [vmem:[#allocation7 + $0x30] sm:$0xff]
    %v117 = vld [vmem:[#allocation7 + $0x38] sm:$0xff]
    %v118 = vld [vmem:[#allocation7 + $0x40] sm:$0xff]
    %v119 = vld [vmem:[#allocation7 + $0x48] sm:$0xff]
    %v120 = vld [vmem:[#allocation7 + $0x50] sm:$0xff]
    %v121 = vld [vmem:[#allocation7 + $0x58] sm:$0xff]
    %v122 = vld [vmem:[#allocation7 + $0x60] sm:$0xff]
    %v123 = vld [vmem:[#allocation7 + $0x68] sm:$0xff]
    %v124 = vld [vmem:[#allocation7 + $0x70] sm:$0xff]
    %v125 = vld [vmem:[#allocation7 + $0x78] sm:$0xff]
    %v126 = vld [vmem:[#allocation7 + $0x80] sm:$0xff]
    %v127 = vld [vmem:[#allocation7 + $0x88] sm:$0xff]
    %v128 = vld [vmem:[#allocation7 + $0x90] sm:$0xff]
    %v129 = vld [vmem:[#allocation7 + $0x98] sm:$0xff]
    %v130 = vld [vmem:[#allocation7 + $0xa0] sm:$0xff]
    %v131 = vld [vmem:[#allocation7 + $0xa8] sm:$0xff]
    %v132 = vld [vmem:[#allocation7 + $0xb0] sm:$0xff]
    %v133 = vld [vmem:[#allocation7 + $0xb8] sm:$0xff]
    %v134 = vld [vmem:[#allocation7 + $0xc0] sm:$0xff]
    %v135 = vld [vmem:[#allocation7 + $0xc8] sm:$0xff]
    %v136 = vld [vmem:[#allocation7 + $0xd0] sm:$0xff]
    %v137 = vld [vmem:[#allocation7 + $0xd8] sm:$0xff]
    %v138 = vld [vmem:[#allocation7 + $0xe0] sm:$0xff]
    %v139 = vld [vmem:[#allocation7 + $0xe8] sm:$0xff]
    %v140 = vld [vmem:[#allocation7 + $0xf0] sm:$0xff]
    %v141 = vld [vmem:[#allocation7 + $0xf8] sm:$0xff]
    %v142 = vld [vmem:[#allocation7 + $0x100] sm:$0xff]
    %v143 = vld [vmem:[#allocation7 + $0x108] sm:$0xff]
    %v144 = vld [vmem:[#allocation7 + $0x110] sm:$0xff]
    %v145 = vld [vmem:[#allocation7 + $0x118] sm:$0xff]
    %v146 = vld [vmem:[#allocation7 + $0x120] sm:$0xff]
    %v147 = vld [vmem:[#allocation7 + $0x128] sm:$0xff]
    %v148 = vld [vmem:[#allocation7 + $0x130] sm:$0xff]
    %v149 = vld [vmem:[#allocation7 + $0x138] sm:$0xff]
    %v150 = vld [vmem:[#allocation7 + $0x140] sm:$0xff]
    %v151 = vld [vmem:[#allocation7 + $0x148] sm:$0xff]
    %v152 = vld [vmem:[#allocation7 + $0x150] sm:$0xff]
    %v153 = vld [vmem:[#allocation7 + $0x158] sm:$0xff]
    %v154 = vld [vmem:[#allocation7 + $0x160] sm:$0xff]
    %v155 = vld [vmem:[#allocation7 + $0x168] sm:$0xff]
    %v156 = vld [vmem:[#allocation7 + $0x170] sm:$0xff]
    %v157 = vld [vmem:[#allocation7 + $0x178] sm:$0xff]
    %v158 = vld [vmem:[#allocation7 + $0x180] sm:$0xff]
    %v159 = vld [vmem:[#allocation7 + $0x188] sm:$0xff]
    %v160 = vld [vmem:[#allocation7 + $0x190] sm:$0xff]
    %v161 = vld [vmem:[#allocation7 + $0x198] sm:$0xff]
    %v162 = vld [vmem:[#allocation7 + $0x1a0] sm:$0xff]
    %v163 = vld [vmem:[#allocation7 + $0x1a8] sm:$0xff]
    %v164 = vld [vmem:[#allocation7 + $0x1b0] sm:$0xff]
    %v165 = vld [vmem:[#allocation7 + $0x1b8] sm:$0xff]
    %v166 = vld [vmem:[#allocation7 + $0x1c0] sm:$0xff]
    %v167 = vld [vmem:[#allocation7 + $0x1c8] sm:$0xff]
    %v168 = vld [vmem:[#allocation7 + $0x1d0] sm:$0xff]
    %v169 = vld [vmem:[#allocation7 + $0x1d8] sm:$0xff]
    %v170 = vld [vmem:[#allocation7 + $0x1e0] sm:$0xff]
    %v171 = vld [vmem:[#allocation7 + $0x1e8] sm:$0xff]
    %v172 = vld [vmem:[#allocation7 + $0x1f0] sm:$0xff]
    %v173 = vld [vmem:[#allocation7 + $0x1f8] sm:$0xff]
    %v174 = vld [vmem:[#allocation7 + $0x200] sm:$0xff]
    %v175 = vld [vmem:[#allocation7 + $0x208] sm:$0xff]
    %v176 = vld [vmem:[#allocation7 + $0x210] sm:$0xff]
    %v177 = vld [vmem:[#allocation7 + $0x218] sm:$0xff]
    %v178 = vld [vmem:[#allocation7 + $0x220] sm:$0xff]
    %v179 = vld [vmem:[#allocation7 + $0x228] sm:$0xff]
    %v180 = vld [vmem:[#allocation7 + $0x230] sm:$0xff]
    %v181 = vld [vmem:[#allocation7 + $0x238] sm:$0xff]
    %v182 = vld [vmem:[#allocation7 + $0x240] sm:$0xff]
    %v183 = vld [vmem:[#allocation7 + $0x248] sm:$0xff]
    %v184 = vld [vmem:[#allocation7 + $0x250] sm:$0xff]
    %v185 = vld [vmem:[#allocation7 + $0x258] sm:$0xff]
    %v186 = vld [vmem:[#allocation7 + $0x260] sm:$0xff]
    %v187 = vld [vmem:[#allocation7 + $0x268] sm:$0xff]
    %v188 = vld [vmem:[#allocation7 + $0x270] sm:$0xff]
    %v189 = vld [vmem:[#allocation7 + $0x278] sm:$0xff]
    %v190 = vld [vmem:[#allocation7 + $0x280] sm:$0xff]
    %v191 = vld [vmem:[#allocation7 + $0x288] sm:$0xff]
    %v192 = vld [vmem:[#allocation7 + $0x290] sm:$0xff]
    %v193 = vld [vmem:[#allocation7 + $0x298] sm:$0xff]
    %v194 = vld [vmem:[#allocation7 + $0x2a0] sm:$0xff]
    %v195 = vld [vmem:[#allocation7 + $0x2a8] sm:$0xff]
    %v196 = vld [vmem:[#allocation7 + $0x2b0] sm:$0xff]
    %v197 = vld [vmem:[#allocation7 + $0x2b8] sm:$0xff]
    %v198 = vld [vmem:[#allocation7 + $0x2c0] sm:$0xff]
    %v199 = vld [vmem:[#allocation7 + $0x2c8] sm:$0xff]
    %v200 = vld [vmem:[#allocation7 + $0x2d0] sm:$0xff]
    %v201 = vld [vmem:[#allocation7 + $0x2d8] sm:$0xff]
    %v202 = vld [vmem:[#allocation7 + $0x2e0] sm:$0xff]
    %v203 = vld [vmem:[#allocation7 + $0x2e8] sm:$0xff]
    %v204 = vld [vmem:[#allocation7 + $0x2f0] sm:$0xff]
    %v205 = vld [vmem:[#allocation7 + $0x2f8] sm:$0xff]
    %v206 = vld [vmem:[%s4] sm:$0x3f]
    %v208 = vperm.slane %v206, 0
    %v209 = vperm.slane %v206, 1
    %v210 = vperm.slane %v206, 2
    %v211 = vperm.slane %v206, 3
    %v212 = vperm.slane %v206, 4
    %v213 = vperm.slane %v206, 5
    %220 = vmatpush.msra.mxu0 %v200
    %221 = vmatpush.msra.mxu0 %v194
    %222 = vmatpush.msra.mxu0 %v188
    %223 = vmatpush.msra.mxu0 %v182
    %224 = vmatpush.msra.mxu0 %v176
    %225 = vmatpush.msra.mxu0 %v170
    %226 = vmatpush.msra.mxu0 %v164
    %227 = vmatpush.msra.mxu0 %v158
    %228 = vmatpush.msra.mxu0 %v152
    %229 = vmatpush.msra.mxu0 %v146
    %230 = vmatpush.msra.mxu0 %v140
    %231 = vmatpush.msra.mxu0 %v134
    %232 = vmatpush.msra.mxu0 %v128
    %233 = vmatpush.msra.mxu0 %v122
    %234 = vmatpush.msra.mxu0 %v116
    %235 = vmatpush.msra.mxu0 %v110
    %236 = vmatmul.f32.gmra.mxu0 %v102
    %v237 = vpop.f32.mrf.mxu0
    %v238 = vadd.f32 %v208, %v237
    %239 = vmatmul.f32.gmra.mxu0 %v103
    %v240 = vpop.f32.mrf.mxu0
    %v241 = vadd.f32 %v208, %v240
    %242 = vmatmul.f32.gmra.mxu0 %v104
    %v243 = vpop.f32.mrf.mxu0
    %v244 = vadd.f32 %v208, %v243
    %245 = vmatmul.f32.gmra.mxu0 %v105
    %v246 = vpop.f32.mrf.mxu0
    %v247 = vadd.f32 %v208, %v246
    %248 = vmatmul.f32.gmra.mxu0 %v106
    %v249 = vpop.f32.mrf.mxu0
    %v250 = vadd.f32 %v208, %v249
    %251 = vmatmul.f32.gmra.mxu0 %v107
    %v252 = vpop.f32.mrf.mxu0
    %v253 = vadd.f32 %v208, %v252
    %254 = vmatmul.f32.gmra.mxu0 %v108
    %v255 = vpop.f32.mrf.mxu0
    %v256 = vadd.f32 %v208, %v255
    %257 = vmatmul.f32.gmra.mxu0 %v109
    %v258 = vpop.f32.mrf.mxu0
    %v259 = vadd.f32 %v208, %v258
    %260 = vdwg.mxu0
    %261 = vmatpush.msra.mxu0 %v201
    %262 = vmatpush.msra.mxu0 %v195
    %263 = vmatpush.msra.mxu0 %v189
    %264 = vmatpush.msra.mxu0 %v183
    %265 = vmatpush.msra.mxu0 %v177
    %266 = vmatpush.msra.mxu0 %v171
    %267 = vmatpush.msra.mxu0 %v165
    %268 = vmatpush.msra.mxu0 %v159
    %269 = vmatpush.msra.mxu0 %v153
    %270 = vmatpush.msra.mxu0 %v147
    %271 = vmatpush.msra.mxu0 %v141
    %272 = vmatpush.msra.mxu0 %v135
    %273 = vmatpush.msra.mxu0 %v129
    %274 = vmatpush.msra.mxu0 %v123
    %275 = vmatpush.msra.mxu0 %v117
    %276 = vmatpush.msra.mxu0 %v111
    %277 = vmatmul.f32.gmra.mxu0 %v102
    %v278 = vpop.f32.mrf.mxu0
    %v279 = vadd.f32 %v209, %v278
    %280 = vmatmul.f32.gmra.mxu0 %v103
    %v281 = vpop.f32.mrf.mxu0
    %v282 = vadd.f32 %v209, %v281
    %283 = vmatmul.f32.gmra.mxu0 %v104
    %v284 = vpop.f32.mrf.mxu0
    %v285 = vadd.f32 %v209, %v284
    %286 = vmatmul.f32.gmra.mxu0 %v105
    %v287 = vpop.f32.mrf.mxu0
    %v288 = vadd.f32 %v209, %v287
    %289 = vmatmul.f32.gmra.mxu0 %v106
    %v290 = vpop.f32.mrf.mxu0
    %v291 = vadd.f32 %v209, %v290
    %292 = vmatmul.f32.gmra.mxu0 %v107
    %v293 = vpop.f32.mrf.mxu0
    %v294 = vadd.f32 %v209, %v293
    %295 = vmatmul.f32.gmra.mxu0 %v108
    %v296 = vpop.f32.mrf.mxu0
    %v297 = vadd.f32 %v209, %v296
    %298 = vmatmul.f32.gmra.mxu0 %v109
    %v299 = vpop.f32.mrf.mxu0
    %v300 = vadd.f32 %v209, %v299
    %301 = vdwg.mxu0
    %302 = vmatpush.msra.mxu0 %v202
    %303 = vmatpush.msra.mxu0 %v196
    %304 = vmatpush.msra.mxu0 %v190
    %305 = vmatpush.msra.mxu0 %v184
    %306 = vmatpush.msra.mxu0 %v178
    %307 = vmatpush.msra.mxu0 %v172
    %308 = vmatpush.msra.mxu0 %v166
    %309 = vmatpush.msra.mxu0 %v160
    %310 = vmatpush.msra.mxu0 %v154
    %311 = vmatpush.msra.mxu0 %v148
    %312 = vmatpush.msra.mxu0 %v142
    %313 = vmatpush.msra.mxu0 %v136
    %314 = vmatpush.msra.mxu0 %v130
    %315 = vmatpush.msra.mxu0 %v124
    %316 = vmatpush.msra.mxu0 %v118
    %317 = vmatpush.msra.mxu0 %v112
    %318 = vmatmul.f32.gmra.mxu0 %v102
    %v319 = vpop.f32.mrf.mxu0
    %v320 = vadd.f32 %v210, %v319
    %321 = vmatmul.f32.gmra.mxu0 %v103
    %v322 = vpop.f32.mrf.mxu0
    %v323 = vadd.f32 %v210, %v322
    %324 = vmatmul.f32.gmra.mxu0 %v104
    %v325 = vpop.f32.mrf.mxu0
    %v326 = vadd.f32 %v210, %v325
    %327 = vmatmul.f32.gmra.mxu0 %v105
    %v328 = vpop.f32.mrf.mxu0
    %v329 = vadd.f32 %v210, %v328
    %330 = vmatmul.f32.gmra.mxu0 %v106
    %v331 = vpop.f32.mrf.mxu0
    %v332 = vadd.f32 %v210, %v331
    %333 = vmatmul.f32.gmra.mxu0 %v107
    %v334 = vpop.f32.mrf.mxu0
    %v335 = vadd.f32 %v210, %v334
    %336 = vmatmul.f32.gmra.mxu0 %v108
    %v337 = vpop.f32.mrf.mxu0
    %v338 = vadd.f32 %v210, %v337
    %339 = vmatmul.f32.gmra.mxu0 %v109
    %v340 = vpop.f32.mrf.mxu0
    %v341 = vadd.f32 %v210, %v340
    %342 = vdwg.mxu0
    %343 = vmatpush.msra.mxu0 %v203
    %344 = vmatpush.msra.mxu0 %v197
    %345 = vmatpush.msra.mxu0 %v191
    %346 = vmatpush.msra.mxu0 %v185
    %347 = vmatpush.msra.mxu0 %v179
    %348 = vmatpush.msra.mxu0 %v173
    %349 = vmatpush.msra.mxu0 %v167
    %350 = vmatpush.msra.mxu0 %v161
    %351 = vmatpush.msra.mxu0 %v155
    %352 = vmatpush.msra.mxu0 %v149
    %353 = vmatpush.msra.mxu0 %v143
    %354 = vmatpush.msra.mxu0 %v137
    %355 = vmatpush.msra.mxu0 %v131
    %356 = vmatpush.msra.mxu0 %v125
    %357 = vmatpush.msra.mxu0 %v119
    %358 = vmatpush.msra.mxu0 %v113
    %359 = vmatmul.f32.gmra.mxu0 %v102
    %v360 = vpop.f32.mrf.mxu0
    %v361 = vadd.f32 %v211, %v360
    %362 = vmatmul.f32.gmra.mxu0 %v103
    %v363 = vpop.f32.mrf.mxu0
    %v364 = vadd.f32 %v211, %v363
    %365 = vmatmul.f32.gmra.mxu0 %v104
    %v366 = vpop.f32.mrf.mxu0
    %v367 = vadd.f32 %v211, %v366
    %368 = vmatmul.f32.gmra.mxu0 %v105
    %v369 = vpop.f32.mrf.mxu0
    %v370 = vadd.f32 %v211, %v369
    %371 = vmatmul.f32.gmra.mxu0 %v106
    %v372 = vpop.f32.mrf.mxu0
    %v373 = vadd.f32 %v211, %v372
    %374 = vmatmul.f32.gmra.mxu0 %v107
    %v375 = vpop.f32.mrf.mxu0
    %v376 = vadd.f32 %v211, %v375
    %377 = vmatmul.f32.gmra.mxu0 %v108
    %v378 = vpop.f32.mrf.mxu0
    %v379 = vadd.f32 %v211, %v378
    %380 = vmatmul.f32.gmra.mxu0 %v109
    %v381 = vpop.f32.mrf.mxu0
    %v382 = vadd.f32 %v211, %v381
    %383 = vdwg.mxu0
    %384 = vmatpush.msra.mxu0 %v204
    %385 = vmatpush.msra.mxu0 %v198
    %386 = vmatpush.msra.mxu0 %v192
    %387 = vmatpush.msra.mxu0 %v186
    %388 = vmatpush.msra.mxu0 %v180
    %389 = vmatpush.msra.mxu0 %v174
    %390 = vmatpush.msra.mxu0 %v168
    %391 = vmatpush.msra.mxu0 %v162
    %392 = vmatpush.msra.mxu0 %v156
    %393 = vmatpush.msra.mxu0 %v150
    %394 = vmatpush.msra.mxu0 %v144
    %395 = vmatpush.msra.mxu0 %v138
    %396 = vmatpush.msra.mxu0 %v132
    %397 = vmatpush.msra.mxu0 %v126
    %398 = vmatpush.msra.mxu0 %v120
    %399 = vmatpush.msra.mxu0 %v114
    %400 = vmatmul.f32.gmra.mxu0 %v102
    %v401 = vpop.f32.mrf.mxu0
    %v402 = vadd.f32 %v212, %v401
    %403 = vmatmul.f32.gmra.mxu0 %v103
    %v404 = vpop.f32.mrf.mxu0
    %v405 = vadd.f32 %v212, %v404
    %406 = vmatmul.f32.gmra.mxu0 %v104
    %v407 = vpop.f32.mrf.mxu0
    %v408 = vadd.f32 %v212, %v407
    %409 = vmatmul.f32.gmra.mxu0 %v105
    %v410 = vpop.f32.mrf.mxu0
    %v411 = vadd.f32 %v212, %v410
    %412 = vmatmul.f32.gmra.mxu0 %v106
    %v413 = vpop.f32.mrf.mxu0
    %v414 = vadd.f32 %v212, %v413
    %415 = vmatmul.f32.gmra.mxu0 %v107
    %v416 = vpop.f32.mrf.mxu0
    %v417 = vadd.f32 %v212, %v416
    %418 = vmatmul.f32.gmra.mxu0 %v108
    %v419 = vpop.f32.mrf.mxu0
    %v420 = vadd.f32 %v212, %v419
    %421 = vmatmul.f32.gmra.mxu0 %v109
    %v422 = vpop.f32.mrf.mxu0
    %v423 = vadd.f32 %v212, %v422
    %424 = vdwg.mxu0
    %425 = vmatpush.msra.mxu0 %v205
    %426 = vmatpush.msra.mxu0 %v199
    %427 = vmatpush.msra.mxu0 %v193
    %428 = vmatpush.msra.mxu0 %v187
    %429 = vmatpush.msra.mxu0 %v181
    %430 = vmatpush.msra.mxu0 %v175
    %431 = vmatpush.msra.mxu0 %v169
    %432 = vmatpush.msra.mxu0 %v163
    %433 = vmatpush.msra.mxu0 %v157
    %434 = vmatpush.msra.mxu0 %v151
    %435 = vmatpush.msra.mxu0 %v145
    %436 = vmatpush.msra.mxu0 %v139
    %437 = vmatpush.msra.mxu0 %v133
    %438 = vmatpush.msra.mxu0 %v127
    %439 = vmatpush.msra.mxu0 %v121
    %440 = vmatpush.msra.mxu0 %v115
    %441 = vmatmul.f32.gmra.mxu0 %v102
    %v442 = vpop.f32.mrf.mxu0
    %v443 = vadd.f32 %v213, %v442
    %444 = vmatmul.f32.gmra.mxu0 %v103
    %v445 = vpop.f32.mrf.mxu0
    %v446 = vadd.f32 %v213, %v445
    %447 = vmatmul.f32.gmra.mxu0 %v104
    %v448 = vpop.f32.mrf.mxu0
    %v449 = vadd.f32 %v213, %v448
    %450 = vmatmul.f32.gmra.mxu0 %v105
    %v451 = vpop.f32.mrf.mxu0
    %v452 = vadd.f32 %v213, %v451
    %453 = vmatmul.f32.gmra.mxu0 %v106
    %v454 = vpop.f32.mrf.mxu0
    %v455 = vadd.f32 %v213, %v454
    %456 = vmatmul.f32.gmra.mxu0 %v107
    %v457 = vpop.f32.mrf.mxu0
    %v458 = vadd.f32 %v213, %v457
    %459 = vmatmul.f32.gmra.mxu0 %v108
    %v460 = vpop.f32.mrf.mxu0
    %v461 = vadd.f32 %v213, %v460
    %462 = vmatmul.f32.gmra.mxu0 %v109
    %v463 = vpop.f32.mrf.mxu0
    %v464 = vadd.f32 %v213, %v463
    %465 = vdwg.mxu0
    %466 = vst [vmem:[#allocation2] sm:$0xff] %v238
    %467 = vst [vmem:[#allocation2 + $0x8] sm:$0xff] %v279
    %468 = vst [vmem:[#allocation2 + $0x10] sm:$0xff] %v320
    %469 = vst [vmem:[#allocation2 + $0x18] sm:$0xff] %v361
    %470 = vst [vmem:[#allocation2 + $0x20] sm:$0xff] %v402
    %471 = vst [vmem:[#allocation2 + $0x28] sm:$0xff] %v443
    %472 = vst [vmem:[#allocation2 + $0x30] sm:$0xff] %v241
    %473 = vst [vmem:[#allocation2 + $0x38] sm:$0xff] %v282
    %474 = vst [vmem:[#allocation2 + $0x40] sm:$0xff] %v323
    %475 = vst [vmem:[#allocation2 + $0x48] sm:$0xff] %v364
    %476 = vst [vmem:[#allocation2 + $0x50] sm:$0xff] %v405
    %477 = vst [vmem:[#allocation2 + $0x58] sm:$0xff] %v446
    %478 = vst [vmem:[#allocation2 + $0x60] sm:$0xff] %v244
    %479 = vst [vmem:[#allocation2 + $0x68] sm:$0xff] %v285
    %480 = vst [vmem:[#allocation2 + $0x70] sm:$0xff] %v326
    %481 = vst [vmem:[#allocation2 + $0x78] sm:$0xff] %v367
    %482 = vst [vmem:[#allocation2 + $0x80] sm:$0xff] %v408
    %483 = vst [vmem:[#allocation2 + $0x88] sm:$0xff] %v449
    %484 = vst [vmem:[#allocation2 + $0x90] sm:$0xff] %v247
    %485 = vst [vmem:[#allocation2 + $0x98] sm:$0xff] %v288
    %486 = vst [vmem:[#allocation2 + $0xa0] sm:$0xff] %v329
    %487 = vst [vmem:[#allocation2 + $0xa8] sm:$0xff] %v370
    %488 = vst [vmem:[#allocation2 + $0xb0] sm:$0xff] %v411
    %489 = vst [vmem:[#allocation2 + $0xb8] sm:$0xff] %v452
    %490 = vst [vmem:[#allocation2 + $0xc0] sm:$0xff] %v250
    %491 = vst [vmem:[#allocation2 + $0xc8] sm:$0xff] %v291
    %492 = vst [vmem:[#allocation2 + $0xd0] sm:$0xff] %v332
    %493 = vst [vmem:[#allocation2 + $0xd8] sm:$0xff] %v373
    %494 = vst [vmem:[#allocation2 + $0xe0] sm:$0xff] %v414
    %495 = vst [vmem:[#allocation2 + $0xe8] sm:$0xff] %v455
    %496 = vst [vmem:[#allocation2 + $0xf0] sm:$0xff] %v253
    %497 = vst [vmem:[#allocation2 + $0xf8] sm:$0xff] %v294
    %498 = vst [vmem:[#allocation2 + $0x100] sm:$0xff] %v335
    %499 = vst [vmem:[#allocation2 + $0x108] sm:$0xff] %v376
    %500 = vst [vmem:[#allocation2 + $0x110] sm:$0xff] %v417
    %501 = vst [vmem:[#allocation2 + $0x118] sm:$0xff] %v458
    %502 = vst [vmem:[#allocation2 + $0x120] sm:$0xff] %v256
    %503 = vst [vmem:[#allocation2 + $0x128] sm:$0xff] %v297
    %504 = vst [vmem:[#allocation2 + $0x130] sm:$0xff] %v338
    %505 = vst [vmem:[#allocation2 + $0x138] sm:$0xff] %v379
    %506 = vst [vmem:[#allocation2 + $0x140] sm:$0xff] %v420
    %507 = vst [vmem:[#allocation2 + $0x148] sm:$0xff] %v461
    %508 = vst [vmem:[#allocation2 + $0x150] sm:$0xff] %v259
    %509 = vst [vmem:[#allocation2 + $0x158] sm:$0xff] %v300
    %510 = vst [vmem:[#allocation2 + $0x160] sm:$0xff] %v341
    %511 = vst [vmem:[#allocation2 + $0x168] sm:$0xff] %v382
    %512 = vst [vmem:[#allocation2 + $0x170] sm:$0xff] %v423
    %513 = vst [vmem:[#allocation2 + $0x178] sm:$0xff] %v464
    %514 = vst [vmem:[#allocation12] sm:$0xff] 0.0
    %515 = vst [vmem:[#allocation12 + $0x8] sm:$0xff] 0.0
    %516 = vst [vmem:[#allocation12 + $0x10] sm:$0xff] 0.0
    %517 = vst [vmem:[#allocation12 + $0x18] sm:$0xff] 0.0
    %518 = vst [vmem:[#allocation12 + $0x20] sm:$0xff] 0.0
    %519 = vst [vmem:[#allocation12 + $0x28] sm:$0xff] 0.0
    %520 = vst [vmem:[#allocation12 + $0x30] sm:$0xff] 0.0
    %521 = vst [vmem:[#allocation12 + $0x38] sm:$0xff] 0.0
    %522 = vst [vmem:[#allocation12 + $0x40] sm:$0xff] 0.0
    %523 = vst [vmem:[#allocation12 + $0x48] sm:$0xff] 0.0
    %524 = vst [vmem:[#allocation12 + $0x50] sm:$0xff] 0.0
    %525 = vst [vmem:[#allocation12 + $0x58] sm:$0xff] 0.0
    %526 = vst [vmem:[#allocation12 + $0x60] sm:$0xff] 0.0
    %527 = vst [vmem:[#allocation12 + $0x68] sm:$0xff] 0.0
    %528 = vst [vmem:[#allocation12 + $0x70] sm:$0xff] 0.0
    %529 = vst [vmem:[#allocation12 + $0x78] sm:$0xff] 0.0
    %v530 = vld [vmem:[%s6] sm:$0x7]
    %v531 = vld [vmem:[%s8] sm:$0x7]
    // While loop
    $region54: #{tpu_custom_call.1} parent=1 // loop_pre_header
      _
    $region55: #{tpu_custom_call.1} parent=1 // loop_header
      %s533 = sphi 0, %s535
      %p534 = scmp.ge.s32.totalorder %s533, %s100
      %v538 = vphi 0.0, %v902
      %v539 = vphi 0.0, %v903
    $region56: #{tpu_custom_call.1} parent=1 // loop_header_branch
      %537 = sbr.rel (%p534) target = $region60
    $region57: #{tpu_custom_call.1} parent=1 // loop_body
      %s540 = ssub.s32 %s100, 1
      %s541 = ssub.s32 %s540, %s533
      %v542 = vld [vmem:[#allocation9] sm:$0xff]
      %v543 = vld [vmem:[#allocation9 + $0x8] sm:$0xff]
      %v544 = vld [vmem:[#allocation9 + $0x10] sm:$0xff]
      %v545 = vld [vmem:[#allocation9 + $0x18] sm:$0xff]
      %v546 = vld [vmem:[#allocation9 + $0x20] sm:$0xff]
      %v547 = vld [vmem:[#allocation9 + $0x28] sm:$0xff]
      %v548 = vld [vmem:[#allocation9 + $0x30] sm:$0xff]
      %v549 = vld [vmem:[#allocation9 + $0x38] sm:$0xff]
      %v550 = vld [vmem:[#allocation9 + $0x40] sm:$0xff]
      %v551 = vld [vmem:[#allocation9 + $0x48] sm:$0xff]
      %v552 = vld [vmem:[#allocation9 + $0x50] sm:$0xff]
      %v553 = vld [vmem:[#allocation9 + $0x58] sm:$0xff]
      %v554 = vld [vmem:[#allocation9 + $0x60] sm:$0xff]
      %v555 = vld [vmem:[#allocation9 + $0x68] sm:$0xff]
      %v556 = vld [vmem:[#allocation9 + $0x70] sm:$0xff]
      %v557 = vld [vmem:[#allocation9 + $0x78] sm:$0xff]
      %v558 = vld [vmem:[#allocation9 + $0x80] sm:$0xff]
      %v559 = vld [vmem:[#allocation9 + $0x88] sm:$0xff]
      %v560 = vld [vmem:[#allocation9 + $0x90] sm:$0xff]
      %v561 = vld [vmem:[#allocation9 + $0x98] sm:$0xff]
      %v562 = vld [vmem:[#allocation9 + $0xa0] sm:$0xff]
      %v563 = vld [vmem:[#allocation9 + $0xa8] sm:$0xff]
      %v564 = vld [vmem:[#allocation9 + $0xb0] sm:$0xff]
      %v565 = vld [vmem:[#allocation9 + $0xb8] sm:$0xff]
      %v566 = vld [vmem:[#allocation9 + $0xc0] sm:$0xff]
      %v567 = vld [vmem:[#allocation9 + $0xc8] sm:$0xff]
      %v568 = vld [vmem:[#allocation9 + $0xd0] sm:$0xff]
      %v569 = vld [vmem:[#allocation9 + $0xd8] sm:$0xff]
      %v570 = vld [vmem:[#allocation9 + $0xe0] sm:$0xff]
      %v571 = vld [vmem:[#allocation9 + $0xe8] sm:$0xff]
      %v572 = vld [vmem:[#allocation9 + $0xf0] sm:$0xff]
      %v573 = vld [vmem:[#allocation9 + $0xf8] sm:$0xff]
      %v574 = vld [vmem:[#allocation9 + $0x100] sm:$0xff]
      %v575 = vld [vmem:[#allocation9 + $0x108] sm:$0xff]
      %v576 = vld [vmem:[#allocation9 + $0x110] sm:$0xff]
      %v577 = vld [vmem:[#allocation9 + $0x118] sm:$0xff]
      %v578 = vld [vmem:[#allocation9 + $0x120] sm:$0xff]
      %v579 = vld [vmem:[#allocation9 + $0x128] sm:$0xff]
      %v580 = vld [vmem:[#allocation9 + $0x130] sm:$0xff]
      %v581 = vld [vmem:[#allocation9 + $0x138] sm:$0xff]
      %v582 = vld [vmem:[#allocation9 + $0x140] sm:$0xff]
      %v583 = vld [vmem:[#allocation9 + $0x148] sm:$0xff]
      %v584 = vld [vmem:[#allocation9 + $0x150] sm:$0xff]
      %v585 = vld [vmem:[#allocation9 + $0x158] sm:$0xff]
      %v586 = vld [vmem:[#allocation9 + $0x160] sm:$0xff]
      %v587 = vld [vmem:[#allocation9 + $0x168] sm:$0xff]
      %v588 = vld [vmem:[#allocation9 + $0x170] sm:$0xff]
      %v589 = vld [vmem:[#allocation9 + $0x178] sm:$0xff]
      %v591 = vperm.slane %v530, 0
      %v592 = vperm.slane %v530, 1
      %v593 = vperm.slane %v530, 2
      %597 = vmatpush.msra.mxu0 %v587
      %598 = vmatpush.msra.mxu0 %v584
      %599 = vmatpush.msra.mxu0 %v581
      %600 = vmatpush.msra.mxu0 %v578
      %601 = vmatpush.msra.mxu0 %v575
      %602 = vmatpush.msra.mxu0 %v572
      %603 = vmatpush.msra.mxu0 %v569
      %604 = vmatpush.msra.mxu0 %v566
      %605 = vmatpush.msra.mxu0 %v563
      %606 = vmatpush.msra.mxu0 %v560
      %607 = vmatpush.msra.mxu0 %v557
      %608 = vmatpush.msra.mxu0 %v554
      %609 = vmatpush.msra.mxu0 %v551
      %610 = vmatpush.msra.mxu0 %v548
      %611 = vmatpush.msra.mxu0 %v545
      %612 = vmatpush.msra.mxu0 %v542
      %613 = vmatmul.f32.gmra.mxu0 %v538
      %v614 = vpop.f32.mrf.mxu0
      %v615 = vadd.f32 %v591, %v614
      %616 = vdwg.mxu0
      %617 = vmatpush.msra.mxu0 %v588
      %618 = vmatpush.msra.mxu0 %v585
      %619 = vmatpush.msra.mxu0 %v582
      %620 = vmatpush.msra.mxu0 %v579
      %621 = vmatpush.msra.mxu0 %v576
      %622 = vmatpush.msra.mxu0 %v573
      %623 = vmatpush.msra.mxu0 %v570
      %624 = vmatpush.msra.mxu0 %v567
      %625 = vmatpush.msra.mxu0 %v564
      %626 = vmatpush.msra.mxu0 %v561
      %627 = vmatpush.msra.mxu0 %v558
      %628 = vmatpush.msra.mxu0 %v555
      %629 = vmatpush.msra.mxu0 %v552
      %630 = vmatpush.msra.mxu0 %v549
      %631 = vmatpush.msra.mxu0 %v546
      %632 = vmatpush.msra.mxu0 %v543
      %633 = vmatmul.f32.gmra.mxu0 %v538
      %v634 = vpop.f32.mrf.mxu0
      %v635 = vadd.f32 %v592, %v634
      %636 = vdwg.mxu0
      %637 = vmatpush.msra.mxu0 %v589
      %638 = vmatpush.msra.mxu0 %v586
      %639 = vmatpush.msra.mxu0 %v583
      %640 = vmatpush.msra.mxu0 %v580
      %641 = vmatpush.msra.mxu0 %v577
      %642 = vmatpush.msra.mxu0 %v574
      %643 = vmatpush.msra.mxu0 %v571
      %644 = vmatpush.msra.mxu0 %v568
      %645 = vmatpush.msra.mxu0 %v565
      %646 = vmatpush.msra.mxu0 %v562
      %647 = vmatpush.msra.mxu0 %v559
      %648 = vmatpush.msra.mxu0 %v556
      %649 = vmatpush.msra.mxu0 %v553
      %650 = vmatpush.msra.mxu0 %v550
      %651 = vmatpush.msra.mxu0 %v547
      %652 = vmatpush.msra.mxu0 %v544
      %653 = vmatmul.f32.gmra.mxu0 %v538
      %v654 = vpop.f32.mrf.mxu0
      %v655 = vadd.f32 %v593, %v654
      %656 = vdwg.mxu0
      %v657 = vld [vmem:[#allocation10] sm:$0xff]
      %v658 = vld [vmem:[#allocation10 + $0x8] sm:$0xff]
      %v659 = vld [vmem:[#allocation10 + $0x10] sm:$0xff]
      %v660 = vld [vmem:[#allocation10 + $0x18] sm:$0xff]
      %v661 = vld [vmem:[#allocation10 + $0x20] sm:$0xff]
      %v662 = vld [vmem:[#allocation10 + $0x28] sm:$0xff]
      %v663 = vld [vmem:[#allocation10 + $0x30] sm:$0xff]
      %v664 = vld [vmem:[#allocation10 + $0x38] sm:$0xff]
      %v665 = vld [vmem:[#allocation10 + $0x40] sm:$0xff]
      %v666 = vld [vmem:[#allocation10 + $0x48] sm:$0xff]
      %v667 = vld [vmem:[#allocation10 + $0x50] sm:$0xff]
      %v668 = vld [vmem:[#allocation10 + $0x58] sm:$0xff]
      %v669 = vld [vmem:[#allocation10 + $0x60] sm:$0xff]
      %v670 = vld [vmem:[#allocation10 + $0x68] sm:$0xff]
      %v671 = vld [vmem:[#allocation10 + $0x70] sm:$0xff]
      %v672 = vld [vmem:[#allocation10 + $0x78] sm:$0xff]
      %v673 = vld [vmem:[#allocation10 + $0x80] sm:$0xff]
      %v674 = vld [vmem:[#allocation10 + $0x88] sm:$0xff]
      %v675 = vld [vmem:[#allocation10 + $0x90] sm:$0xff]
      %v676 = vld [vmem:[#allocation10 + $0x98] sm:$0xff]
      %v677 = vld [vmem:[#allocation10 + $0xa0] sm:$0xff]
      %v678 = vld [vmem:[#allocation10 + $0xa8] sm:$0xff]
      %v679 = vld [vmem:[#allocation10 + $0xb0] sm:$0xff]
      %v680 = vld [vmem:[#allocation10 + $0xb8] sm:$0xff]
      %v681 = vld [vmem:[#allocation10 + $0xc0] sm:$0xff]
      %v682 = vld [vmem:[#allocation10 + $0xc8] sm:$0xff]
      %v683 = vld [vmem:[#allocation10 + $0xd0] sm:$0xff]
      %v684 = vld [vmem:[#allocation10 + $0xd8] sm:$0xff]
      %v685 = vld [vmem:[#allocation10 + $0xe0] sm:$0xff]
      %v686 = vld [vmem:[#allocation10 + $0xe8] sm:$0xff]
      %v687 = vld [vmem:[#allocation10 + $0xf0] sm:$0xff]
      %v688 = vld [vmem:[#allocation10 + $0xf8] sm:$0xff]
      %v689 = vld [vmem:[#allocation10 + $0x100] sm:$0xff]
      %v690 = vld [vmem:[#allocation10 + $0x108] sm:$0xff]
      %v691 = vld [vmem:[#allocation10 + $0x110] sm:$0xff]
      %v692 = vld [vmem:[#allocation10 + $0x118] sm:$0xff]
      %v693 = vld [vmem:[#allocation10 + $0x120] sm:$0xff]
      %v694 = vld [vmem:[#allocation10 + $0x128] sm:$0xff]
      %v695 = vld [vmem:[#allocation10 + $0x130] sm:$0xff]
      %v696 = vld [vmem:[#allocation10 + $0x138] sm:$0xff]
      %v697 = vld [vmem:[#allocation10 + $0x140] sm:$0xff]
      %v698 = vld [vmem:[#allocation10 + $0x148] sm:$0xff]
      %v699 = vld [vmem:[#allocation10 + $0x150] sm:$0xff]
      %v700 = vld [vmem:[#allocation10 + $0x158] sm:$0xff]
      %v701 = vld [vmem:[#allocation10 + $0x160] sm:$0xff]
      %v702 = vld [vmem:[#allocation10 + $0x168] sm:$0xff]
      %v703 = vld [vmem:[#allocation10 + $0x170] sm:$0xff]
      %v704 = vld [vmem:[#allocation10 + $0x178] sm:$0xff]
      %v706 = vperm.slane %v531, 0
      %v707 = vperm.slane %v531, 1
      %v708 = vperm.slane %v531, 2
      %712 = vmatpush.msra.mxu0 %v702
      %713 = vmatpush.msra.mxu0 %v699
      %714 = vmatpush.msra.mxu0 %v696
      %715 = vmatpush.msra.mxu0 %v693
      %716 = vmatpush.msra.mxu0 %v690
      %717 = vmatpush.msra.mxu0 %v687
      %718 = vmatpush.msra.mxu0 %v684
      %719 = vmatpush.msra.mxu0 %v681
      %720 = vmatpush.msra.mxu0 %v678
      %721 = vmatpush.msra.mxu0 %v675
      %722 = vmatpush.msra.mxu0 %v672
      %723 = vmatpush.msra.mxu0 %v669
      %724 = vmatpush.msra.mxu0 %v666
      %725 = vmatpush.msra.mxu0 %v663
      %726 = vmatpush.msra.mxu0 %v660
      %727 = vmatpush.msra.mxu0 %v657
      %728 = vmatmul.f32.gmra.mxu0 %v539
      %v729 = vpop.f32.mrf.mxu0
      %v730 = vadd.f32 %v706, %v729
      %731 = vdwg.mxu0
      %732 = vmatpush.msra.mxu0 %v703
      %733 = vmatpush.msra.mxu0 %v700
      %734 = vmatpush.msra.mxu0 %v697
      %735 = vmatpush.msra.mxu0 %v694
      %736 = vmatpush.msra.mxu0 %v691
      %737 = vmatpush.msra.mxu0 %v688
      %738 = vmatpush.msra.mxu0 %v685
      %739 = vmatpush.msra.mxu0 %v682
      %740 = vmatpush.msra.mxu0 %v679
      %741 = vmatpush.msra.mxu0 %v676
      %742 = vmatpush.msra.mxu0 %v673
      %743 = vmatpush.msra.mxu0 %v670
      %744 = vmatpush.msra.mxu0 %v667
      %745 = vmatpush.msra.mxu0 %v664
      %746 = vmatpush.msra.mxu0 %v661
      %747 = vmatpush.msra.mxu0 %v658
      %748 = vmatmul.f32.gmra.mxu0 %v539
      %v749 = vpop.f32.mrf.mxu0
      %v750 = vadd.f32 %v707, %v749
      %751 = vdwg.mxu0
      %752 = vmatpush.msra.mxu0 %v704
      %753 = vmatpush.msra.mxu0 %v701
      %754 = vmatpush.msra.mxu0 %v698
      %755 = vmatpush.msra.mxu0 %v695
      %756 = vmatpush.msra.mxu0 %v692
      %757 = vmatpush.msra.mxu0 %v689
      %758 = vmatpush.msra.mxu0 %v686
      %759 = vmatpush.msra.mxu0 %v683
      %760 = vmatpush.msra.mxu0 %v680
      %761 = vmatpush.msra.mxu0 %v677
      %762 = vmatpush.msra.mxu0 %v674
      %763 = vmatpush.msra.mxu0 %v671
      %764 = vmatpush.msra.mxu0 %v668
      %765 = vmatpush.msra.mxu0 %v665
      %766 = vmatpush.msra.mxu0 %v662
      %767 = vmatpush.msra.mxu0 %v659
      %768 = vmatmul.f32.gmra.mxu0 %v539
      %v769 = vpop.f32.mrf.mxu0
      %v770 = vadd.f32 %v708, %v769
      %771 = vdwg.mxu0
      %s772 = smul.u32 %s533, 6
      %s773 = smul.addr %s772, 8
      %s774 = scalar_lea.vmem [#allocation2], %s773
      %v775 = vld [vmem:[%s774] sm:$0xff]
      %v776 = vld [vmem:[%s774 + $0x8] sm:$0xff]
      %v777 = vld [vmem:[%s774 + $0x10] sm:$0xff]
      %s778 = smul.u32 %s541, 6
      %s779 = smul.addr %s778, 8
      %s780 = scalar_lea.vmem [#allocation2], %s779
      %v781 = vld [vmem:[%s780 + $0x18] sm:$0xff]
      %v782 = vld [vmem:[%s780 + $0x20] sm:$0xff]
      %v783 = vld [vmem:[%s780 + $0x28] sm:$0xff]
      %v784 = vadd.f32 %v775, %v615
      %v785 = vxor.u32 %v784, 2147483648
      %v786 = vmul.f32 %v785, 1.442695
      %v787 = vpow.pop %v786
      %v788 = vadd.f32 %v787, 1.0
      %v789 = vrcp.pop %v788
      %v790 = vmul.f32 %v788, %v789
      %v791 = vsub.f32 1.0, %v790
      %v792 = vmul.f32 %v789, %v791
      %v793 = vadd.f32 %v789, %v792
      %vm794 = vweird.f32 %v788
      %vm795 = vweird.f32 %v789
      %vm796 = vmor %vm794, %vm795
      %v797 = vsel %vm796, %v789, %v793
      %v798 = vand.u32 2147483647, %v788
      %vm799 = vcmp.eq.f32.partialorder %v798, 8.507059e+37
      %v800 = vand.u32 %v788, 2147483648
      %v801 = vor.u32 1.1754944e-38, %v800
      %v802 = vsel %vm799, %v801, %v797
      %v803 = vmul.f32 1.0, %v802
      %v804 = vadd.f32 %v776, %v635
      %v805 = vxor.u32 %v804, 2147483648
      %v806 = vmul.f32 %v805, 1.442695
      %v807 = vpow.pop %v806
      %v808 = vadd.f32 %v807, 1.0
      %v809 = vrcp.pop %v808
      %v810 = vmul.f32 %v808, %v809
      %v811 = vsub.f32 1.0, %v810
      %v812 = vmul.f32 %v809, %v811
      %v813 = vadd.f32 %v809, %v812
      %vm814 = vweird.f32 %v808
      %vm815 = vweird.f32 %v809
      %vm816 = vmor %vm814, %vm815
      %v817 = vsel %vm816, %v809, %v813
      %v818 = vand.u32 2147483647, %v808
      %vm819 = vcmp.eq.f32.partialorder %v818, 8.507059e+37
      %v820 = vand.u32 %v808, 2147483648
      %v821 = vor.u32 1.1754944e-38, %v820
      %v822 = vsel %vm819, %v821, %v817
      %v823 = vmul.f32 1.0, %v822
      %v824 = vmul.f32 %v803, %v655
      %v825 = vadd.f32 %v777, %v824
      %v826 = vtanh.pop %v825
      %v827 = vsub.f32 1.0, %v823
      %v828 = vmul.f32 %v827, %v826
      %v829 = vmul.f32 %v823, %v538
      %v830 = vadd.f32 %v828, %v829
      %v831 = vadd.f32 %v781, %v730
      %v832 = vxor.u32 %v831, 2147483648
      %v833 = vmul.f32 %v832, 1.442695
      %v834 = vpow.pop %v833
      %v835 = vadd.f32 %v834, 1.0
      %v836 = vrcp.pop %v835
      %v837 = vmul.f32 %v835, %v836
      %v838 = vsub.f32 1.0, %v837
      %v839 = vmul.f32 %v836, %v838
      %v840 = vadd.f32 %v836, %v839
      %vm841 = vweird.f32 %v835
      %vm842 = vweird.f32 %v836
      %vm843 = vmor %vm841, %vm842
      %v844 = vsel %vm843, %v836, %v840
      %v845 = vand.u32 2147483647, %v835
      %vm846 = vcmp.eq.f32.partialorder %v845, 8.507059e+37
      %v847 = vand.u32 %v835, 2147483648
      %v848 = vor.u32 1.1754944e-38, %v847
      %v849 = vsel %vm846, %v848, %v844
      %v850 = vmul.f32 1.0, %v849
      %v851 = vadd.f32 %v782, %v750
      %v852 = vxor.u32 %v851, 2147483648
      %v853 = vmul.f32 %v852, 1.442695
      %v854 = vpow.pop %v853
      %v855 = vadd.f32 %v854, 1.0
      %v856 = vrcp.pop %v855
      %v857 = vmul.f32 %v855, %v856
      %v858 = vsub.f32 1.0, %v857
      %v859 = vmul.f32 %v856, %v858
      %v860 = vadd.f32 %v856, %v859
      %vm861 = vweird.f32 %v855
      %vm862 = vweird.f32 %v856
      %vm863 = vmor %vm861, %vm862
      %v864 = vsel %vm863, %v856, %v860
      %v865 = vand.u32 2147483647, %v855
      %vm866 = vcmp.eq.f32.partialorder %v865, 8.507059e+37
      %v867 = vand.u32 %v855, 2147483648
      %v868 = vor.u32 1.1754944e-38, %v867
      %v869 = vsel %vm866, %v868, %v864
      %v870 = vmul.f32 1.0, %v869
      %v871 = vmul.f32 %v850, %v770
      %v872 = vadd.f32 %v783, %v871
      %v873 = vtanh.pop %v872
      %v874 = vsub.f32 1.0, %v870
      %v875 = vmul.f32 %v874, %v873
      %v876 = vmul.f32 %v870, %v539
      %v877 = vadd.f32 %v875, %v876
      %v878 = vstv %s533
      %vm879 = vcmp.lt.s32.totalorder %v878, %v101
      %v880 = vstv %s541
      %vm881 = vcmp.lt.s32.totalorder %v880, %v101
      %v882 = vsel %vm879, 1, 0
      %883 = vset.pattern.permute.xlu0 0
      %884 = vperm.xlu0 %883, %v882
      %v885 = vpop.permute.xlu0 %884
      %vm886 = vcmp.eq.s32.totalorder %v885, 1
      %v887 = vsel %vm886, %v830, 0.0
      %s888 = smul.u32 %s533, 2
      %s889 = smul.addr %s888, 8
      %s890 = scalar_lea.vmem [#allocation12], %s889
      %891 = vst [vmem:[%s890] sm:$0xff] %v887
      %v892 = vsel %vm881, 1, 0
      %893 = vset.pattern.permute.xlu0 0
      %894 = vperm.xlu0 %893, %v892
      %v895 = vpop.permute.xlu0 %894
      %vm896 = vcmp.eq.s32.totalorder %v895, 1
      %v897 = vsel %vm896, %v877, 0.0
      %s898 = smul.u32 %s541, 2
      %s899 = smul.addr %s898, 8
      %s900 = scalar_lea.vmem [#allocation12], %s899
      %901 = vst [vmem:[%s900 + $0x8] sm:$0xff] %v897
      %v902 = vsel %vm886, %v830, %v538
      %v903 = vsel %vm896, %v877, %v539
    $region58: #{tpu_custom_call.1} parent=1 // loop_footer
      %s535 = sadd.s32 %s533, 1
    $region59: #{tpu_custom_call.1} parent=1 // loop_footer_branch
      %532 = sbr.rel target = $region55
    $region60: #{tpu_custom_call.1} parent=1 // loop_exit
      _
    %904 = vst [vmem:[#allocation13] sm:$0xff] %v538
    %905 = vst [vmem:[#allocation13 + $0x8] sm:$0xff] %v539
    // Predicated region
    $region61: #{tpu_custom_call.1} parent=1 // pred_check
      _
    $region62: #{tpu_custom_call.1} parent=1 // pred_check_branch
      %907 = sbr.rel (0) target = $region64
    $region63: #{tpu_custom_call.1} parent=1 // pred_region
      %909 = vsyncadd [#allocation6], 0
      %s910 = sshll.u32 [#allocation12], 4
      %s911 = int_to_ptr.vmem [resolvable:$true] %s910
      %s912 = sshll.u32 %s9, 4
      %s913 = int_to_ptr.hbm [resolvable:$true] %s912
      %918 = dma.vmem_to_hbm [thread:$0]  %s911, 2048, %s913, [#allocation6], 256, 256, 16
    $region64: #{tpu_custom_call.1} parent=1 // pred_fallthru
      _
    // Predicated region
    $region65: #{tpu_custom_call.1} parent=1 // pred_check
      _
    $region66: #{tpu_custom_call.1} parent=1 // pred_check_branch
      %920 = sbr.rel (0) target = $region68
    $region67: #{tpu_custom_call.1} parent=1 // pred_region
      %922 = vsyncadd [#allocation14], 0
      %s924 = sshll.u32 [#allocation13], 4
      %s925 = int_to_ptr.vmem [resolvable:$true] %s924
      %s926 = sshll.u32 %s10, 4
      %s927 = int_to_ptr.hbm [resolvable:$true] %s926
      %929 = dma.vmem_to_hbm [thread:$0]  %s925, 256, %s927, [#allocation14]
    $region68: #{tpu_custom_call.1} parent=1 // pred_fallthru
      _
    // Predicated region
    $region69: #{tpu_custom_call.1} parent=1 // pred_check
      _
    $region70: #{tpu_custom_call.1} parent=1 // pred_check_branch
      %931 = sbr.rel (0) target = $region72
    $region71: #{tpu_custom_call.1} parent=1 // pred_region
      %933 = dma.done [#allocation6], 2048
    $region72: #{tpu_custom_call.1} parent=1 // pred_fallthru
      _
    // Predicated region
    $region73: #{tpu_custom_call.1} parent=1 // pred_check
      _
    $region74: #{tpu_custom_call.1} parent=1 // pred_check_branch
      %935 = sbr.rel (0) target = $region76
    $region75: #{tpu_custom_call.1} parent=1 // pred_region
      %937 = dma.done [#allocation14], 256
    $region76: #{tpu_custom_call.1} parent=1 // pred_fallthru
      _
    %938 = vsyncpa [#allocation5], 1
    %939 = vsyncpa [#allocation8], 1
    %940 = vsyncpa [#allocation11], 1
    %941 = vsyncpa [#allocation6], 1
    %942 = vsyncpa [#allocation14], 1

</llo_original>
